<compile_context>
chip_gen: v5e
topology: v5e:2x2
jax: 0.10.0
libtpu: 0.0.40
codegen_flags: <defaults>
</compile_context>

<pallas_src>
import functools

import jax
import jax.numpy as jnp
from jax.experimental import pallas as pl
from jax.experimental.pallas import tpu as pltpu


def _make_hbm_copy_kernel(num_chunks: int, chunk: int):
    """Build a kernel copying x_hbm -> o_hbm via `num_chunks` overlapped DMAs."""

    def kernel(x_hbm, o_hbm, sems):
        copies = []
        for c in range(num_chunks):
            if num_chunks == 1:
                src, dst = x_hbm, o_hbm
            else:
                lo = c * chunk  # static slice -> zero-cost ref view
                src = x_hbm.at[lo:lo + chunk]
                dst = o_hbm.at[lo:lo + chunk]
            cp = pltpu.make_async_copy(src, dst, sems.at[c])
            cp.start()
            copies.append(cp)
        # Wait for all chunks -> copies overlap each other.
        for cp in copies:
            cp.wait()

    return kernel


def _pallas_hbm_copy(x: jax.Array) -> jax.Array:
    """Exact copy of `x` into a fresh buffer via HBM->HBM DMA (no VMEM staging)."""
    # Pick 4 / 2 / 1 even chunks along the leading axis for overlapped DMAs.
    lead = x.shape[0]
    num_chunks = 1
    for n in (4, 2):
        if lead >= n and lead % n == 0:
            num_chunks = n
            break
    chunk = lead // num_chunks

    return pl.pallas_call(
        _make_hbm_copy_kernel(num_chunks, chunk),
        out_shape=jax.ShapeDtypeStruct(x.shape, x.dtype),
        in_specs=[pl.BlockSpec(memory_space=pl.ANY)],   # raw HBM ref, no auto-DMA
        out_specs=pl.BlockSpec(memory_space=pl.ANY),    # written only by the DMAs
        scratch_shapes=[pltpu.SemaphoreType.DMA((num_chunks,))],
        compiler_params=pltpu.CompilerParams(has_side_effects=True),
        cost_estimate=pl.CostEstimate(
            flops=0,
            transcendentals=0,
            bytes_accessed=2 * x.size * x.dtype.itemsize,
        ),
    )(x)


@functools.partial(jax.jit, static_argnames="expected_dim")
def unsqueeze_forward(x: jax.Array, expected_dim: int) -> jax.Array:
    """Replicates torch Unsqueeze.forward.

    If x.ndim == expected_dim - 1, a leading dim of size 1 is added and the
    data flows through the Pallas HBM->HBM copy kernel into a fresh buffer
    (x itself stays valid); otherwise x is returned unchanged.
    """
    if x.ndim != expected_dim - 1:
        return x  # pass-through: free, semantically identical to torch

    out_shape = (1,) + x.shape
    if x.size == 0:
        return x.reshape(out_shape)  # nothing to copy

    # Ensure the kernel sees a rank >= 1 array; reshape is free metadata.
    src = x if x.ndim >= 1 else x.reshape(1)
    y = _pallas_hbm_copy(src)
    return y.reshape(out_shape)


if __name__ == "__main__":
    key = jax.random.PRNGKey(0)
    k1, k2, k3 = jax.random.split(key, 3)

    # Case 1: input missing the batch dim -> (C, H, W) with expected_dim=4
    # (4 chunked DMAs of one channel each).
    x_unbatched = jax.random.normal(k1, (4, 16, 16), dtype=jnp.float32)
    y1 = jax.block_until_ready(unsqueeze_forward(x_unbatched, expected_dim=4))
    assert y1.shape == (1, 4, 16, 16), y1.shape
    assert jnp.array_equal(y1[0], x_unbatched), "unsqueeze copy mismatch"
    # Input must remain valid and unchanged (torch view semantics, no donation).
    assert jnp.array_equal(x_unbatched, y1[0]), "input invalidated"

    # Case 2: input already batched -> returned unchanged, no kernel work
    x_batched = jax.random.normal(k2, (2, 4, 16, 16), dtype=jnp.float32)
    y2 = jax.block_until_ready(unsqueeze_forward(x_batched, expected_dim=4))
    assert y2.shape == (2, 4, 16, 16), y2.shape
    assert jnp.array_equal(y2, x_batched), "pass-through mismatch"

    # Case 3: larger unbatched input, non-trivially shaped -> 2 overlapped
    # DMA chunks; no lane-dense reshape or VMEM tiling needed.
    x_large = jax.random.normal(k3, (2, 512, 640), dtype=jnp.float32)
    y3 = jax.block_until_ready(unsqueeze_forward(x_large, expected_dim=4))
    assert y3.shape == (1, 2, 512, 640), y3.shape
    assert jnp.array_equal(y3[0], x_large), "DMA copy mismatch"

    print("KERNEL_OK")
</pallas_src>

<mosaic_0001>
module attributes {stable_mosaic.version = 11 : i64} {
  func.func @kernel(%arg0: memref<4x16x16xf32, #tpu.memory_space<any>>, %arg1: memref<4x16x16xf32, #tpu.memory_space<any>>, %arg2: memref<4x!tpu.dma_semaphore, #tpu.memory_space<semaphore_mem>>) attributes {dimension_semantics = [], scalar_prefetch = 0 : i64, scratch_operands = 1 : i64, tpu.core_type = #tpu.core_type<tc>} {
    %c0_i32 = arith.constant 0 : i32
    %c0_i32_0 = arith.constant 0 : i32
    %c0_i32_1 = arith.constant 0 : i32
    %c0_i32_2 = arith.constant 0 : i32
    %0 = tpu.memref_slice %arg0[%c0_i32_0, %c0_i32_1, %c0_i32_2] : memref<4x16x16xf32, #tpu.memory_space<any>> -> memref<1x16x16xf32, #tpu.memory_space<any>>
    %c0_i32_3 = arith.constant 0 : i32
    %c0_i32_4 = arith.constant 0 : i32
    %c0_i32_5 = arith.constant 0 : i32
    %1 = tpu.memref_slice %arg1[%c0_i32_3, %c0_i32_4, %c0_i32_5] : memref<4x16x16xf32, #tpu.memory_space<any>> -> memref<1x16x16xf32, #tpu.memory_space<any>>
    %2 = tpu.memref_slice %arg2[%c0_i32] : memref<4x!tpu.dma_semaphore, #tpu.memory_space<semaphore_mem>> -> memref<1x!tpu.dma_semaphore, #tpu.memory_space<semaphore_mem>>
    %3 = tpu.memref_squeeze %2 : memref<1x!tpu.dma_semaphore, #tpu.memory_space<semaphore_mem>> -> memref<!tpu.dma_semaphore, #tpu.memory_space<semaphore_mem>>
    tpu.enqueue_dma source(%0 : memref<1x16x16xf32, #tpu.memory_space<any>>) target(%1 : memref<1x16x16xf32, #tpu.memory_space<any>>) target_semaphore(%3 : memref<!tpu.dma_semaphore, #tpu.memory_space<semaphore_mem>>)
    %c1_i32 = arith.constant 1 : i32
    %c1_i32_6 = arith.constant 1 : i32
    %c0_i32_7 = arith.constant 0 : i32
    %c0_i32_8 = arith.constant 0 : i32
    %4 = tpu.memref_slice %arg0[%c1_i32_6, %c0_i32_7, %c0_i32_8] : memref<4x16x16xf32, #tpu.memory_space<any>> -> memref<1x16x16xf32, #tpu.memory_space<any>>
    %c1_i32_9 = arith.constant 1 : i32
    %c0_i32_10 = arith.constant 0 : i32
    %c0_i32_11 = arith.constant 0 : i32
    %5 = tpu.memref_slice %arg1[%c1_i32_9, %c0_i32_10, %c0_i32_11] : memref<4x16x16xf32, #tpu.memory_space<any>> -> memref<1x16x16xf32, #tpu.memory_space<any>>
    %6 = tpu.memref_slice %arg2[%c1_i32] : memref<4x!tpu.dma_semaphore, #tpu.memory_space<semaphore_mem>> -> memref<1x!tpu.dma_semaphore, #tpu.memory_space<semaphore_mem>>
    %7 = tpu.memref_squeeze %6 : memref<1x!tpu.dma_semaphore, #tpu.memory_space<semaphore_mem>> -> memref<!tpu.dma_semaphore, #tpu.memory_space<semaphore_mem>>
    tpu.enqueue_dma source(%4 : memref<1x16x16xf32, #tpu.memory_space<any>>) target(%5 : memref<1x16x16xf32, #tpu.memory_space<any>>) target_semaphore(%7 : memref<!tpu.dma_semaphore, #tpu.memory_space<semaphore_mem>>)
    %c2_i32 = arith.constant 2 : i32
    %c2_i32_12 = arith.constant 2 : i32
    %c0_i32_13 = arith.constant 0 : i32
    %c0_i32_14 = arith.constant 0 : i32
    %8 = tpu.memref_slice %arg0[%c2_i32_12, %c0_i32_13, %c0_i32_14] : memref<4x16x16xf32, #tpu.memory_space<any>> -> memref<1x16x16xf32, #tpu.memory_space<any>>
    %c2_i32_15 = arith.constant 2 : i32
    %c0_i32_16 = arith.constant 0 : i32
    %c0_i32_17 = arith.constant 0 : i32
    %9 = tpu.memref_slice %arg1[%c2_i32_15, %c0_i32_16, %c0_i32_17] : memref<4x16x16xf32, #tpu.memory_space<any>> -> memref<1x16x16xf32, #tpu.memory_space<any>>
    %10 = tpu.memref_slice %arg2[%c2_i32] : memref<4x!tpu.dma_semaphore, #tpu.memory_space<semaphore_mem>> -> memref<1x!tpu.dma_semaphore, #tpu.memory_space<semaphore_mem>>
    %11 = tpu.memref_squeeze %10 : memref<1x!tpu.dma_semaphore, #tpu.memory_space<semaphore_mem>> -> memref<!tpu.dma_semaphore, #tpu.memory_space<semaphore_mem>>
    tpu.enqueue_dma source(%8 : memref<1x16x16xf32, #tpu.memory_space<any>>) target(%9 : memref<1x16x16xf32, #tpu.memory_space<any>>) target_semaphore(%11 : memref<!tpu.dma_semaphore, #tpu.memory_space<semaphore_mem>>)
    %c3_i32 = arith.constant 3 : i32
    %c3_i32_18 = arith.constant 3 : i32
    %c0_i32_19 = arith.constant 0 : i32
    %c0_i32_20 = arith.constant 0 : i32
    %12 = tpu.memref_slice %arg0[%c3_i32_18, %c0_i32_19, %c0_i32_20] : memref<4x16x16xf32, #tpu.memory_space<any>> -> memref<1x16x16xf32, #tpu.memory_space<any>>
    %c3_i32_21 = arith.constant 3 : i32
    %c0_i32_22 = arith.constant 0 : i32
    %c0_i32_23 = arith.constant 0 : i32
    %13 = tpu.memref_slice %arg1[%c3_i32_21, %c0_i32_22, %c0_i32_23] : memref<4x16x16xf32, #tpu.memory_space<any>> -> memref<1x16x16xf32, #tpu.memory_space<any>>
    %14 = tpu.memref_slice %arg2[%c3_i32] : memref<4x!tpu.dma_semaphore, #tpu.memory_space<semaphore_mem>> -> memref<1x!tpu.dma_semaphore, #tpu.memory_space<semaphore_mem>>
    %15 = tpu.memref_squeeze %14 : memref<1x!tpu.dma_semaphore, #tpu.memory_space<semaphore_mem>> -> memref<!tpu.dma_semaphore, #tpu.memory_space<semaphore_mem>>
    tpu.enqueue_dma source(%12 : memref<1x16x16xf32, #tpu.memory_space<any>>) target(%13 : memref<1x16x16xf32, #tpu.memory_space<any>>) target_semaphore(%15 : memref<!tpu.dma_semaphore, #tpu.memory_space<semaphore_mem>>)
    %c0_i32_24 = arith.constant 0 : i32
    %c0_i32_25 = arith.constant 0 : i32
    %c0_i32_26 = arith.constant 0 : i32
    %c0_i32_27 = arith.constant 0 : i32
    %16 = tpu.memref_slice %arg0[%c0_i32_25, %c0_i32_26, %c0_i32_27] : memref<4x16x16xf32, #tpu.memory_space<any>> -> memref<1x16x16xf32, #tpu.memory_space<any>>
    %c0_i32_28 = arith.constant 0 : i32
    %c0_i32_29 = arith.constant 0 : i32
    %c0_i32_30 = arith.constant 0 : i32
    %17 = tpu.memref_slice %arg1[%c0_i32_28, %c0_i32_29, %c0_i32_30] : memref<4x16x16xf32, #tpu.memory_space<any>> -> memref<1x16x16xf32, #tpu.memory_space<any>>
    %18 = tpu.memref_slice %arg2[%c0_i32_24] : memref<4x!tpu.dma_semaphore, #tpu.memory_space<semaphore_mem>> -> memref<1x!tpu.dma_semaphore, #tpu.memory_space<semaphore_mem>>
    %19 = tpu.memref_squeeze %18 : memref<1x!tpu.dma_semaphore, #tpu.memory_space<semaphore_mem>> -> memref<!tpu.dma_semaphore, #tpu.memory_space<semaphore_mem>>
    tpu.wait_dma2 semaphore(%19 : memref<!tpu.dma_semaphore, #tpu.memory_space<semaphore_mem>>) src(%16 : memref<1x16x16xf32, #tpu.memory_space<any>>) dst(%17 : memref<1x16x16xf32, #tpu.memory_space<any>>)
    %c1_i32_31 = arith.constant 1 : i32
    %c1_i32_32 = arith.constant 1 : i32
    %c0_i32_33 = arith.constant 0 : i32
    %c0_i32_34 = arith.constant 0 : i32
    %20 = tpu.memref_slice %arg0[%c1_i32_32, %c0_i32_33, %c0_i32_34] : memref<4x16x16xf32, #tpu.memory_space<any>> -> memref<1x16x16xf32, #tpu.memory_space<any>>
    %c1_i32_35 = arith.constant 1 : i32
    %c0_i32_36 = arith.constant 0 : i32
    %c0_i32_37 = arith.constant 0 : i32
    %21 = tpu.memref_slice %arg1[%c1_i32_35, %c0_i32_36, %c0_i32_37] : memref<4x16x16xf32, #tpu.memory_space<any>> -> memref<1x16x16xf32, #tpu.memory_space<any>>
    %22 = tpu.memref_slice %arg2[%c1_i32_31] : memref<4x!tpu.dma_semaphore, #tpu.memory_space<semaphore_mem>> -> memref<1x!tpu.dma_semaphore, #tpu.memory_space<semaphore_mem>>
    %23 = tpu.memref_squeeze %22 : memref<1x!tpu.dma_semaphore, #tpu.memory_space<semaphore_mem>> -> memref<!tpu.dma_semaphore, #tpu.memory_space<semaphore_mem>>
    tpu.wait_dma2 semaphore(%23 : memref<!tpu.dma_semaphore, #tpu.memory_space<semaphore_mem>>) src(%20 : memref<1x16x16xf32, #tpu.memory_space<any>>) dst(%21 : memref<1x16x16xf32, #tpu.memory_space<any>>)
    %c2_i32_38 = arith.constant 2 : i32
    %c2_i32_39 = arith.constant 2 : i32
    %c0_i32_40 = arith.constant 0 : i32
    %c0_i32_41 = arith.constant 0 : i32
    %24 = tpu.memref_slice %arg0[%c2_i32_39, %c0_i32_40, %c0_i32_41] : memref<4x16x16xf32, #tpu.memory_space<any>> -> memref<1x16x16xf32, #tpu.memory_space<any>>
    %c2_i32_42 = arith.constant 2 : i32
    %c0_i32_43 = arith.constant 0 : i32
    %c0_i32_44 = arith.constant 0 : i32
    %25 = tpu.memref_slice %arg1[%c2_i32_42, %c0_i32_43, %c0_i32_44] : memref<4x16x16xf32, #tpu.memory_space<any>> -> memref<1x16x16xf32, #tpu.memory_space<any>>
    %26 = tpu.memref_slice %arg2[%c2_i32_38] : memref<4x!tpu.dma_semaphore, #tpu.memory_space<semaphore_mem>> -> memref<1x!tpu.dma_semaphore, #tpu.memory_space<semaphore_mem>>
    %27 = tpu.memref_squeeze %26 : memref<1x!tpu.dma_semaphore, #tpu.memory_space<semaphore_mem>> -> memref<!tpu.dma_semaphore, #tpu.memory_space<semaphore_mem>>
    tpu.wait_dma2 semaphore(%27 : memref<!tpu.dma_semaphore, #tpu.memory_space<semaphore_mem>>) src(%24 : memref<1x16x16xf32, #tpu.memory_space<any>>) dst(%25 : memref<1x16x16xf32, #tpu.memory_space<any>>)
    %c3_i32_45 = arith.constant 3 : i32
    %c3_i32_46 = arith.constant 3 : i32
    %c0_i32_47 = arith.constant 0 : i32
    %c0_i32_48 = arith.constant 0 : i32
    %28 = tpu.memref_slice %arg0[%c3_i32_46, %c0_i32_47, %c0_i32_48] : memref<4x16x16xf32, #tpu.memory_space<any>> -> memref<1x16x16xf32, #tpu.memory_space<any>>
    %c3_i32_49 = arith.constant 3 : i32
    %c0_i32_50 = arith.constant 0 : i32
    %c0_i32_51 = arith.constant 0 : i32
    %29 = tpu.memref_slice %arg1[%c3_i32_49, %c0_i32_50, %c0_i32_51] : memref<4x16x16xf32, #tpu.memory_space<any>> -> memref<1x16x16xf32, #tpu.memory_space<any>>
    %30 = tpu.memref_slice %arg2[%c3_i32_45] : memref<4x!tpu.dma_semaphore, #tpu.memory_space<semaphore_mem>> -> memref<1x!tpu.dma_semaphore, #tpu.memory_space<semaphore_mem>>
    %31 = tpu.memref_squeeze %30 : memref<1x!tpu.dma_semaphore, #tpu.memory_space<semaphore_mem>> -> memref<!tpu.dma_semaphore, #tpu.memory_space<semaphore_mem>>
    tpu.wait_dma2 semaphore(%31 : memref<!tpu.dma_semaphore, #tpu.memory_space<semaphore_mem>>) src(%28 : memref<1x16x16xf32, #tpu.memory_space<any>>) dst(%29 : memref<1x16x16xf32, #tpu.memory_space<any>>)
    return
  }
}

</mosaic_0001>

<llo_original>
// kernel: unsqueeze_forward.1
$region0: #{unsqueeze_forward.1}
  #allocation0 [shape = 'u32[]', space=smem, size = 0x4, offset = 0x4, fixed_abs, tag = 'smem constant byte address 0x4 - core index']
  #allocation1 [shape = 'u32[72,128]{1,0:T(1,128)}', space=vmem, size = 0x9000, scoped, tag = 'internal scratch']
  #allocation2 [shape = 's32[4]{0}', space=sflag, size = 0x10, scoped, tag = 'scratch operand']
  #allocation3 [shape = 's32[]', space=sflag, size = 0x4, offset = 0, fixed_abs, tag = 'sflag constant byte address 0x0 - dummy sync flag']
  #allocation4 [shape = 'u32[0]{0}', space=smem, size = 0, offset = 0, fixed_abs, tag = 'smem constant byte address 0x0 - null']
  #allocation5 [shape = 's32[]', space=sflag, size = 0x4, offset = 0, fixed_abs, tag = 'sflag constant byte address 0x0 - dummy sync flag']
  #allocation6 [shape = 'u32[0]{0}', space=smem, size = 0, offset = 0, fixed_abs, tag = 'smem constant byte address 0x0 - null']
  #allocation7 [shape = 's32[]', space=sflag, size = 0x4, offset = 0, fixed_abs, tag = 'sflag constant byte address 0x0 - dummy sync flag']
  #allocation8 [shape = 'u32[0]{0}', space=smem, size = 0, offset = 0, fixed_abs, tag = 'smem constant byte address 0x0 - null']
  #allocation9 [shape = 's32[]', space=sflag, size = 0x4, offset = 0, fixed_abs, tag = 'sflag constant byte address 0x0 - dummy sync flag']
  #allocation10 [shape = 'u32[0]{0}', space=smem, size = 0, offset = 0, fixed_abs, tag = 'smem constant byte address 0x0 - null']
  %s0 = inlined_call_operand.hbm [shape: f32[4,16,16], index: 0, kind: input, shape index: {}]
  %s1 = inlined_call_operand.hbm [shape: f32[4,16,16], index: 1, kind: output, shape index: {}]
  %s2 = sld [smem:[#allocation0]]
  $region2: #{unsqueeze_forward.1} parent=0
    _
  %s4 = ssub.s32 1, %s2
  %s5 = scalar_select 0, %s4, %s2
  %s7 = sshll.u32 1, 14
  %s8 = sxor.u32 4294967295, %s7
  %s10 = sshll.u32 %s0, 4
  %s11 = int_to_ptr.hbm [resolvable:$true] %s10
  %s12 = sshll.u32 %s1, 4
  %s13 = int_to_ptr.hbm [resolvable:$true] %s12
  %16 = dma.general %s11, 256, %s13, [#allocation2], [#allocation3], [#allocation4], 0, 0
  %s17 = scalar_lea.hbm %s0, 16
  %s18 = scalar_lea.hbm %s1, 16
  %s19 = scalar_lea.sflag [#allocation2], 1
  %s21 = sshll.u32 1, 14
  %s22 = sxor.u32 4294967295, %s21
  %s24 = sshll.u32 %s17, 4
  %s25 = int_to_ptr.hbm [resolvable:$true] %s24
  %s26 = sshll.u32 %s18, 4
  %s27 = int_to_ptr.hbm [resolvable:$true] %s26
  %30 = dma.general %s25, 256, %s27, %s19, [#allocation5], [#allocation6], 0, 0
  %s31 = scalar_lea.hbm %s0, 32
  %s32 = scalar_lea.hbm %s1, 32
  %s33 = scalar_lea.sflag [#allocation2], 2
  %s35 = sshll.u32 1, 14
  %s36 = sxor.u32 4294967295, %s35
  %s38 = sshll.u32 %s31, 4
  %s39 = int_to_ptr.hbm [resolvable:$true] %s38
  %s40 = sshll.u32 %s32, 4
  %s41 = int_to_ptr.hbm [resolvable:$true] %s40
  %44 = dma.general %s39, 256, %s41, %s33, [#allocation7], [#allocation8], 0, 0
  %s45 = scalar_lea.hbm %s0, 48
  %s46 = scalar_lea.hbm %s1, 48
  %s47 = scalar_lea.sflag [#allocation2], 3
  %s49 = sshll.u32 1, 14
  %s50 = sxor.u32 4294967295, %s49
  %s52 = sshll.u32 %s45, 4
  %s53 = int_to_ptr.hbm [resolvable:$true] %s52
  %s54 = sshll.u32 %s46, 4
  %s55 = int_to_ptr.hbm [resolvable:$true] %s54
  %58 = dma.general %s53, 256, %s55, %s47, [#allocation9], [#allocation10], 0, 0
  %s59 = smul.u32 1, 16
  %s60 = smul.u32 %s59, 1
  %s61 = sshll.u32 %s60, 4
  %62 = dma.done [#allocation2], %s61
  %s63 = sshll.u32 %s60, 4
  %64 = dma.done %s19, %s63
  %s65 = sshll.u32 %s60, 4
  %66 = dma.done %s33, %s65
  %s67 = sshll.u32 %s60, 4
  %68 = dma.done %s47, %s67
  %69 = vsyncmov [#allocation2]
  %s70 = vpop.sfrf %69
  %p71 = scmp.eq.s32.totalorder %s70, 0
  %p72 = pneg %p71
  %74 = shalt.err (%p72)
  %s75 = scalar_lea.sflag [#allocation2], 1
  %76 = vsyncmov %s75
  %s77 = vpop.sfrf %76
  %p78 = scmp.eq.s32.totalorder %s77, 0
  %p79 = pneg %p78
  %81 = shalt.err (%p79)
  %s82 = scalar_lea.sflag [#allocation2], 2
  %83 = vsyncmov %s82
  %s84 = vpop.sfrf %83
  %p85 = scmp.eq.s32.totalorder %s84, 0
  %p86 = pneg %p85
  %88 = shalt.err (%p86)
  %s89 = scalar_lea.sflag [#allocation2], 3
  %90 = vsyncmov %s89
  %s91 = vpop.sfrf %90
  %p92 = scmp.eq.s32.totalorder %s91, 0
  %p93 = pneg %p92
  %95 = shalt.err (%p93)

</llo_original>
